<compile_context>
chip_gen: v7x
topology: tpu7x:2x2x1
jax: 0.10.0
libtpu: 0.0.40
codegen_flags: <defaults>
</compile_context>

<pallas_src>
import jax
import jax.numpy as jnp
from jax.experimental import pallas as pl
from jax.experimental.pallas import tpu as pltpu

_LANE = 128


def _round_up(x, m):
    return ((x + m - 1) // m) * m


def actor_kernel(x_ref, w1_ref, b1_ref, w2_ref, b2_ref, w3_ref, b3_ref, out_ref):
    """Fused 3-layer MLP: (Linear+ReLU) -> (Linear+ReLU) -> Linear (logits).

    x is f32 (unpadded obs_dim), weights are bf16 (hidden dims lane-padded to 128,
    obs/action dims unpadded), biases are f32, matmuls accumulate in f32 on the MXU.
    All compute is per-row, so garbage rows in a partial last batch tile are harmless
    (their output rows are masked on store).
    """
    x = x_ref[...].astype(w1_ref.dtype)
    # feature_extractor: Linear + ReLU
    h1 = jnp.dot(x, w1_ref[...], preferred_element_type=jnp.float32) + b1_ref[...]
    h1 = jnp.maximum(h1, 0.0)
    # net hidden layer: Linear + ReLU
    h2 = jnp.dot(h1.astype(w2_ref.dtype), w2_ref[...],
                 preferred_element_type=jnp.float32) + b2_ref[...]
    h2 = jnp.maximum(h2, 0.0)
    # net output layer: Linear (logits, no activation). Output dim is the true
    # action_dim (narrow, full-extent block) -> no padded lanes to strip downstream.
    logits = jnp.dot(h2.astype(w3_ref.dtype), w3_ref[...],
                     preferred_element_type=jnp.float32) + b3_ref[...]
    out_ref[...] = logits.astype(out_ref.dtype)


def prepare_actor_params(params, compute_dtype=jnp.bfloat16):
    """One-time (per param update) padding + cast of the Actor parameters.

    Hidden feature dims are zero-padded to multiples of 128 lanes (zeros are inert
    through Linear+ReLU); obs_dim and action_dim are left unpadded. Weights are cast
    to `compute_dtype` (bf16 MXU fast path), biases stay f32.
    """
    w1, b1, w2, b2, w3, b3 = params
    H1 = w1.shape[1]
    H2 = w2.shape[1]
    h1_p = _round_up(H1, _LANE)
    h2_p = _round_up(H2, _LANE)
    w1p = jnp.pad(w1, ((0, 0), (0, h1_p - H1))).astype(compute_dtype)
    b1p = jnp.pad(b1.reshape(1, -1), ((0, 0), (0, h1_p - H1))).astype(jnp.float32)
    w2p = jnp.pad(w2, ((0, h1_p - H1), (0, h2_p - H2))).astype(compute_dtype)
    b2p = jnp.pad(b2.reshape(1, -1), ((0, 0), (0, h2_p - H2))).astype(jnp.float32)
    w3p = jnp.pad(w3, ((0, h2_p - H2), (0, 0))).astype(compute_dtype)
    b3p = b3.reshape(1, -1).astype(jnp.float32)
    return (w1p, b1p, w2p, b2p, w3p, b3p)


def _choose_batch_tile(B, align, cap=1024):
    """Batch tile heuristic: big tiles (few grid steps), even step count for v7x."""
    if B <= 2 * align:
        return B                      # tiny batch: single full-extent block
    n_steps = max(2, pl.cdiv(B, cap))  # at least 2 steps so both v7x TCs get work
    if n_steps % 2:
        n_steps += 1                   # even step count shards cleanly across 2 TCs
    tile = _round_up(pl.cdiv(B, n_steps), align)
    return min(tile, cap)


def actor_forward(x, prepared_params, *, batch_tile=None):
    """Pallas-call wrapper.

    x: (B, obs_dim) float32. prepared_params: output of prepare_actor_params()
    (call it once per parameter update, NOT per forward). Returns logits
    (B, action_dim) float32.
    """
    w1p, b1p, w2p, b2p, w3p, b3p = prepared_params
    B, obs_dim = x.shape
    assert w1p.shape[0] == obs_dim, "obs_dim mismatch between x and prepared params"
    h1_p = w1p.shape[1]
    h2_p = w2p.shape[1]
    A = w3p.shape[1]

    # Row alignment: bf16 packs two rows per sublane -> 16; f32 -> 8.
    align = 16 if w1p.dtype == jnp.bfloat16 else 8

    if batch_tile is None:
        batch_tile = _choose_batch_tile(B, align)
    else:
        batch_tile = max(1, min(int(batch_tile), B))
        if batch_tile != B:
            batch_tile = _round_up(batch_tile, align)
            if batch_tile >= B:
                batch_tile = B  # full-extent block is always legal

    grid = (pl.cdiv(B, batch_tile),)

    return pl.pallas_call(
        actor_kernel,
        out_shape=jax.ShapeDtypeStruct((B, A), jnp.float32),
        grid_spec=pltpu.PrefetchScalarGridSpec(
            num_scalar_prefetch=0,
            grid=grid,
            in_specs=[
                # x: tiled over batch, UNPADDED obs_dim (full-extent last dim).
                pl.BlockSpec((batch_tile, obs_dim), lambda i: (i, 0)),
                pl.BlockSpec((obs_dim, h1_p), lambda i: (0, 0)),  # W1 (full, resident)
                pl.BlockSpec((1, h1_p), lambda i: (0, 0)),        # b1
                pl.BlockSpec((h1_p, h2_p), lambda i: (0, 0)),     # W2 (full, resident)
                pl.BlockSpec((1, h2_p), lambda i: (0, 0)),        # b2
                pl.BlockSpec((h2_p, A), lambda i: (0, 0)),        # W3 (full, resident)
                pl.BlockSpec((1, A), lambda i: (0, 0)),           # b3
            ],
            # Narrow (B, action_dim) output: full-extent last dim, no padded lanes,
            # no wrapper slice pass.
            out_specs=pl.BlockSpec((batch_tile, A), lambda i: (i, 0)),
        ),
        compiler_params=pltpu.CompilerParams(
            dimension_semantics=("parallel",),
        ),
    )(x, w1p, b1p, w2p, b2p, w3p, b3p)


def init_actor_params(key, obs_dim, action_dim, net_arch=(32, 32)):
    """Deterministic synthetic init (orthogonal-ish scale, zero biases like layer_init)."""
    h1, h2 = net_arch
    k1, k2, k3 = jax.random.split(key, 3)
    w1 = 0.1 * jax.random.normal(k1, (obs_dim, h1), jnp.float32)
    b1 = jnp.zeros((1, h1), jnp.float32)
    w2 = 0.1 * jax.random.normal(k2, (h1, h2), jnp.float32)
    b2 = jnp.zeros((1, h2), jnp.float32)
    w3 = 0.1 * jax.random.normal(k3, (h2, action_dim), jnp.float32)
    b3 = jnp.zeros((1, action_dim), jnp.float32)
    return (w1, b1, w2, b2, w3, b3)


def actor_forward_ref(x, params, dtype=jnp.float32):
    """Pure-JAX reference (optionally with the same bf16 cast as the kernel path)."""
    w1, b1, w2, b2, w3, b3 = params
    h1 = jnp.maximum(
        jnp.dot(x.astype(dtype), w1.astype(dtype),
                preferred_element_type=jnp.float32) + b1, 0.0)
    h2 = jnp.maximum(
        jnp.dot(h1.astype(dtype), w2.astype(dtype),
                preferred_element_type=jnp.float32) + b2, 0.0)
    return jnp.dot(h2.astype(dtype), w3.astype(dtype),
                   preferred_element_type=jnp.float32) + b3


if __name__ == "__main__":
    OBS_DIM = 16     # obs_shape = (16,)
    ACTION_DIM = 6
    NET_ARCH = (32, 32)

    key = jax.random.PRNGKey(0)
    kx, kx2, kp = jax.random.split(key, 3)
    params = init_actor_params(kp, OBS_DIM, ACTION_DIM, NET_ARCH)
    # Padding / bf16 casting happens ONCE here, not in the per-call forward path.
    prepared = prepare_actor_params(params, compute_dtype=jnp.bfloat16)

    # Small batch (single-block path, typical action selection).
    B = 8
    x = jax.random.normal(kx, (B, OBS_DIM), jnp.float32)
    logits = jax.block_until_ready(actor_forward(x, prepared))
    assert logits.shape == (B, ACTION_DIM)
    ref_bf16 = actor_forward_ref(x, params, dtype=jnp.bfloat16)
    assert jnp.allclose(logits, ref_bf16, atol=1e-3, rtol=1e-3), \
        "Pallas output mismatch vs bf16-matched reference (small batch)"
    ref_f32 = actor_forward_ref(x, params, dtype=jnp.float32)
    assert jnp.allclose(logits, ref_f32, atol=2e-2, rtol=2e-2), \
        "Pallas output mismatch vs f32 reference (small batch)"

    # Larger batch: exercises the multi-step (even) grid with a partial last tile.
    B2 = 40
    x2 = jax.random.normal(kx2, (B2, OBS_DIM), jnp.float32)
    logits2 = jax.block_until_ready(actor_forward(x2, prepared))
    assert logits2.shape == (B2, ACTION_DIM)
    ref2 = actor_forward_ref(x2, params, dtype=jnp.bfloat16)
    assert jnp.allclose(logits2, ref2, atol=1e-3, rtol=1e-3), \
        "Pallas output mismatch vs bf16-matched reference (multi-tile batch)"

    print("KERNEL_OK")
</pallas_src>

<mosaic_0001>
module attributes {stable_mosaic.version = 11 : i64} {
  func.func @actor_kernel(%arg0: i32, %arg1: memref<8x16xf32, #tpu.memory_space<vmem>>, %arg2: memref<16x128xbf16, #tpu.memory_space<vmem>>, %arg3: memref<1x128xf32, #tpu.memory_space<vmem>>, %arg4: memref<128x128xbf16, #tpu.memory_space<vmem>>, %arg5: memref<1x128xf32, #tpu.memory_space<vmem>>, %arg6: memref<128x6xbf16, #tpu.memory_space<vmem>>, %arg7: memref<1x6xf32, #tpu.memory_space<vmem>>, %arg8: memref<8x6xf32, #tpu.memory_space<vmem>>) attributes {dimension_semantics = [#tpu.dimension_semantics<parallel>], iteration_bounds = array<i64: 1>, scalar_prefetch = 0 : i64, scratch_operands = 0 : i64, tpu.core_type = #tpu.core_type<tc>, window_params = [{transform_indices = @transform_0, window_bounds = array<i64: 8, 16>}, {pipeline_mode = #tpu.pipeline_mode<synchronous>, transform_indices = @transform_1, window_bounds = array<i64: 16, 128>}, {pipeline_mode = #tpu.pipeline_mode<synchronous>, transform_indices = @transform_2, window_bounds = array<i64: 1, 128>}, {pipeline_mode = #tpu.pipeline_mode<synchronous>, transform_indices = @transform_3, window_bounds = array<i64: 128, 128>}, {pipeline_mode = #tpu.pipeline_mode<synchronous>, transform_indices = @transform_4, window_bounds = array<i64: 1, 128>}, {pipeline_mode = #tpu.pipeline_mode<synchronous>, transform_indices = @transform_5, window_bounds = array<i64: 128, 6>}, {pipeline_mode = #tpu.pipeline_mode<synchronous>, transform_indices = @transform_6, window_bounds = array<i64: 1, 6>}, {transform_indices = @transform_7, window_bounds = array<i64: 8, 6>}]} {
    %c0 = arith.constant 0 : index
    %c0_0 = arith.constant 0 : index
    %0 = vector.load %arg1[%c0, %c0_0] : memref<8x16xf32, #tpu.memory_space<vmem>>, vector<8x16xf32>
    %1 = arith.truncf %0 : vector<8x16xf32> to vector<8x16xbf16>
    %c0_1 = arith.constant 0 : index
    %c0_2 = arith.constant 0 : index
    %2 = vector.load %arg2[%c0_1, %c0_2] : memref<16x128xbf16, #tpu.memory_space<vmem>>, vector<16x128xbf16>
    %cst = arith.constant dense<0.000000e+00> : vector<8x128xf32>
    %3 = tpu.matmul %1, %2, %cst {dimension_numbers = #tpu.dot_dimension_numbers<[1], [0], [0], [1], [0, 0, 1, 1], [], []>} : vector<8x16xbf16>, vector<16x128xbf16>, vector<8x128xf32> -> vector<8x128xf32>
    %c0_3 = arith.constant 0 : index
    %c0_4 = arith.constant 0 : index
    %4 = vector.load %arg3[%c0_3, %c0_4] : memref<1x128xf32, #tpu.memory_space<vmem>>, vector<1x128xf32>
    %5 = vector.broadcast %4 : vector<1x128xf32> to vector<8x128xf32>
    %6 = arith.addf %3, %5 : vector<8x128xf32>
    %cst_5 = arith.constant 0.000000e+00 : f32
    %7 = vector.broadcast %cst_5 : f32 to vector<8x128xf32>
    %8 = arith.maximumf %6, %7 : vector<8x128xf32>
    %9 = arith.truncf %8 : vector<8x128xf32> to vector<8x128xbf16>
    %c0_6 = arith.constant 0 : index
    %c0_7 = arith.constant 0 : index
    %10 = vector.load %arg4[%c0_6, %c0_7] : memref<128x128xbf16, #tpu.memory_space<vmem>>, vector<128x128xbf16>
    %cst_8 = arith.constant dense<0.000000e+00> : vector<8x128xf32>
    %11 = tpu.matmul %9, %10, %cst_8 {dimension_numbers = #tpu.dot_dimension_numbers<[1], [0], [0], [1], [0, 0, 1, 1], [], []>} : vector<8x128xbf16>, vector<128x128xbf16>, vector<8x128xf32> -> vector<8x128xf32>
    %c0_9 = arith.constant 0 : index
    %c0_10 = arith.constant 0 : index
    %12 = vector.load %arg5[%c0_9, %c0_10] : memref<1x128xf32, #tpu.memory_space<vmem>>, vector<1x128xf32>
    %13 = vector.broadcast %12 : vector<1x128xf32> to vector<8x128xf32>
    %14 = arith.addf %11, %13 : vector<8x128xf32>
    %cst_11 = arith.constant 0.000000e+00 : f32
    %15 = vector.broadcast %cst_11 : f32 to vector<8x128xf32>
    %16 = arith.maximumf %14, %15 : vector<8x128xf32>
    %17 = arith.truncf %16 : vector<8x128xf32> to vector<8x128xbf16>
    %c0_12 = arith.constant 0 : index
    %c0_13 = arith.constant 0 : index
    %18 = vector.load %arg6[%c0_12, %c0_13] : memref<128x6xbf16, #tpu.memory_space<vmem>>, vector<128x6xbf16>
    %cst_14 = arith.constant dense<0.000000e+00> : vector<8x6xf32>
    %19 = tpu.matmul %17, %18, %cst_14 {dimension_numbers = #tpu.dot_dimension_numbers<[1], [0], [0], [1], [0, 0, 1, 1], [], []>} : vector<8x128xbf16>, vector<128x6xbf16>, vector<8x6xf32> -> vector<8x6xf32>
    %c0_15 = arith.constant 0 : index
    %c0_16 = arith.constant 0 : index
    %20 = vector.load %arg7[%c0_15, %c0_16] : memref<1x6xf32, #tpu.memory_space<vmem>>, vector<1x6xf32>
    %21 = vector.broadcast %20 : vector<1x6xf32> to vector<8x6xf32>
    %22 = arith.addf %19, %21 : vector<8x6xf32>
    %c0_17 = arith.constant 0 : index
    %c0_18 = arith.constant 0 : index
    %23 = vector.load %arg8[%c0_17, %c0_18] : memref<8x6xf32, #tpu.memory_space<vmem>>, vector<8x6xf32>
    tpu.vector_store %arg8[%c0_17, %c0_18], %22 {strides = array<i32>} : memref<8x6xf32, #tpu.memory_space<vmem>>, vector<8x6xf32>,
    return
  }
  func.func @transform_0(%arg0: i32) -> (i32, i32) {
    %c0_i32 = arith.constant 0 : i32
    %c0_i32_0 = arith.constant 0 : i32
    return %arg0, %c0_i32 : i32, i32
  }
  func.func @transform_1(%arg0: i32) -> (i32, i32) {
    %c0_i32 = arith.constant 0 : i32
    %c0_i32_0 = arith.constant 0 : i32
    %c0_i32_1 = arith.constant 0 : i32
    return %c0_i32, %c0_i32_0 : i32, i32
  }
  func.func @transform_2(%arg0: i32) -> (i32, i32) {
    %c0_i32 = arith.constant 0 : i32
    %c0_i32_0 = arith.constant 0 : i32
    %c0_i32_1 = arith.constant 0 : i32
    return %c0_i32, %c0_i32_0 : i32, i32
  }
  func.func @transform_3(%arg0: i32) -> (i32, i32) {
    %c0_i32 = arith.constant 0 : i32
    %c0_i32_0 = arith.constant 0 : i32
    %c0_i32_1 = arith.constant 0 : i32
    return %c0_i32, %c0_i32_0 : i32, i32
  }
  func.func @transform_4(%arg0: i32) -> (i32, i32) {
    %c0_i32 = arith.constant 0 : i32
    %c0_i32_0 = arith.constant 0 : i32
    %c0_i32_1 = arith.constant 0 : i32
    return %c0_i32, %c0_i32_0 : i32, i32
  }
  func.func @transform_5(%arg0: i32) -> (i32, i32) {
    %c0_i32 = arith.constant 0 : i32
    %c0_i32_0 = arith.constant 0 : i32
    %c0_i32_1 = arith.constant 0 : i32
    return %c0_i32, %c0_i32_0 : i32, i32
  }
  func.func @transform_6(%arg0: i32) -> (i32, i32) {
    %c0_i32 = arith.constant 0 : i32
    %c0_i32_0 = arith.constant 0 : i32
    %c0_i32_1 = arith.constant 0 : i32
    return %c0_i32, %c0_i32_0 : i32, i32
  }
  func.func @transform_7(%arg0: i32) -> (i32, i32) {
    %c0_i32 = arith.constant 0 : i32
    %c0_i32_0 = arith.constant 0 : i32
    return %arg0, %c0_i32 : i32, i32
  }
}

</mosaic_0001>

<llo_original>
// kernel: tpu_custom_call.1
$region0: #{tpu_custom_call.1}
  #allocation0 [shape = 'u32[]', space=smem, size = 0x4, offset = 0x4, fixed_abs, tag = 'smem constant byte address 0x4 - core index']
  #allocation1 [shape = 'u32[144,128]{1,0:T(1,128)}', space=vmem, size = 0x12000, scoped, tag = 'internal scratch']
  %s0 = inlined_call_operand.vmem [shape: f32[8,16], index: 0, kind: input, shape index: {}]
  %s1 = inlined_call_operand.hbm [shape: bf16[16,128], index: 1, kind: input, shape index: {}]
  %s2 = inlined_call_operand.vmem [shape: f32[1,128], index: 2, kind: input, shape index: {}]
  %s3 = inlined_call_operand.vmem [shape: bf16[128,128], index: 3, kind: input, shape index: {}]
  %s4 = inlined_call_operand.vmem [shape: f32[1,128], index: 4, kind: input, shape index: {}]
  %s5 = inlined_call_operand.vmem [shape: bf16[128,6], index: 5, kind: input, shape index: {}]
  %s6 = inlined_call_operand.vmem [shape: f32[1,6], index: 6, kind: input, shape index: {}]
  %s7 = inlined_call_operand.hbm [shape: f32[8,6], index: 7, kind: output, shape index: {}]
  %s8 = sld [smem:[#allocation0]]
  $region42: #{tpu_custom_call.1} parent=0
    _
  %s10 = ssub.s32 1, %s8
  %s11 = scalar_select 0, %s10, %s8
  $region1: #{tpu_custom_call.1} parent=0
    #allocation2 [shape = 'u8[4096]{0}', space=vmem, size = 0x1000, scoped, tag = 'input window, operand 1, single buffered']
    #allocation3 [shape = 's32[1]{0}', space=sflag, size = 0x4, scoped, tag = 'scoped memory for tpu_custom_call.1']
    #allocation4 [shape = 's32[1]{0}', space=sflag, size = 0x4, scoped, tag = 'scoped memory for tpu_custom_call.1']
    #allocation5 [shape = 'u8[4096]{0}', space=vmem, size = 0x1000, scoped, tag = 'output window, operand 0, single buffered']
    %12 = vsyncpa [#allocation3], 0
    %13 = vsyncpa [#allocation4], 0
    // Predicated region
    $region2: #{tpu_custom_call.1} parent=1 // pred_check
      _
    $region3: #{tpu_custom_call.1} parent=1 // pred_check_branch
      %15 = sbr.rel (0) target = $region5
    $region4: #{tpu_custom_call.1} parent=1 // pred_region
      _
    $region5: #{tpu_custom_call.1} parent=1 // pred_fallthru
      _
    // Predicated region
    $region6: #{tpu_custom_call.1} parent=1 // pred_check
      _
    $region7: #{tpu_custom_call.1} parent=1 // pred_check_branch
      %17 = sbr.rel (0) target = $region9
    $region8: #{tpu_custom_call.1} parent=1 // pred_region
      %s19 = ssub.s32 128, 128
      %20 = vsyncadd [#allocation3], %s19
      %s21 = sshll.u32 [#allocation2], 4
      %s22 = int_to_ptr.vmem [resolvable:$true] %s21
      %27 = dma.hbm_to_vmem [thread:$0]  %s1, 128, %s22, [#allocation3], 64, 64, 4
    $region9: #{tpu_custom_call.1} parent=1 // pred_fallthru
      _
    // Predicated region
    $region10: #{tpu_custom_call.1} parent=1 // pred_check
      _
    $region11: #{tpu_custom_call.1} parent=1 // pred_check_branch
      %29 = sbr.rel (0) target = $region13
    $region12: #{tpu_custom_call.1} parent=1 // pred_region
      _
    $region13: #{tpu_custom_call.1} parent=1 // pred_fallthru
      _
    // Predicated region
    $region14: #{tpu_custom_call.1} parent=1 // pred_check
      _
    $region15: #{tpu_custom_call.1} parent=1 // pred_check_branch
      %31 = sbr.rel (0) target = $region17
    $region16: #{tpu_custom_call.1} parent=1 // pred_region
      _
    $region17: #{tpu_custom_call.1} parent=1 // pred_fallthru
      _
    // Predicated region
    $region18: #{tpu_custom_call.1} parent=1 // pred_check
      _
    $region19: #{tpu_custom_call.1} parent=1 // pred_check_branch
      %33 = sbr.rel (0) target = $region21
    $region20: #{tpu_custom_call.1} parent=1 // pred_region
      _
    $region21: #{tpu_custom_call.1} parent=1 // pred_fallthru
      _
    // Predicated region
    $region22: #{tpu_custom_call.1} parent=1 // pred_check
      _
    $region23: #{tpu_custom_call.1} parent=1 // pred_check_branch
      %35 = sbr.rel (0) target = $region25
    $region24: #{tpu_custom_call.1} parent=1 // pred_region
      _
    $region25: #{tpu_custom_call.1} parent=1 // pred_fallthru
      _
    // Predicated region
    $region26: #{tpu_custom_call.1} parent=1 // pred_check
      _
    $region27: #{tpu_custom_call.1} parent=1 // pred_check_branch
      %37 = sbr.rel (0) target = $region29
    $region28: #{tpu_custom_call.1} parent=1 // pred_region
      _
    $region29: #{tpu_custom_call.1} parent=1 // pred_fallthru
      _
    // Predicated region
    $region30: #{tpu_custom_call.1} parent=1 // pred_check
      _
    $region31: #{tpu_custom_call.1} parent=1 // pred_check_branch
      %39 = sbr.rel (0) target = $region33
    $region32: #{tpu_custom_call.1} parent=1 // pred_region
      %40 = dma.done [#allocation3], 128
    $region33: #{tpu_custom_call.1} parent=1 // pred_fallthru
      _
    %v42 = vld [vmem:[%s0] sm:$0xff]
    %v43 = vpack.c.bf16 %v42, %v42
    %v44 = vld [vmem:[#allocation2] sm:$0xf]
    %v45 = vld [vmem:[#allocation2 + $0x4] sm:$0xf]
    %v46 = vld [vmem:[%s2] sm:$0x1]
    %v48 = vlaneseq
    %v49 = vshrl.u32 %v48, 7
    %v50 = vsub.s32 0, %v49
    %v51 = vrot.slane %v46, %v50
    %v55 = vunpack.c.l.b16 %v44
    %v56 = vunpack.c.l.b16 %v45
    %v57 = vpack.c.b16 %v56, %v55
    %vm59 = vcmask 130048
    %v61 = vsel %vm59, %v43, 0
    %63 = vmatprep.subr.bf16.mxu0 0
    %64 = vmatpush1.bf16.msra.mxu0 %v57
    %65 = vmatprep.subr.bf16.mxu0 0
    %66 = vmatpush1.bf16.msra.mxu0 0
    %67 = vmatprep.subr.bf16.mxu0 0
    %68 = vmatpush1.bf16.msra.mxu0 0
    %69 = vmatprep.subr.bf16.mxu0 0
    %70 = vmatpush1.bf16.msra.mxu0 0
    %71 = vmatprep.subr.bf16.mxu0 0
    %72 = vmatpush1.bf16.msra.mxu0 0
    %73 = vmatprep.subr.bf16.mxu0 0
    %74 = vmatpush1.bf16.msra.mxu0 0
    %75 = vmatprep.subr.bf16.mxu0 0
    %76 = vmatpush1.bf16.msra.mxu0 0
    %77 = vmatprep.subr.bf16.mxu0 0
    %78 = vmatpush1.bf16.msra.mxu0 0
    %79 = vmatprep.subr.bf16.mxu0 0
    %80 = vmatpush1.bf16.msra.mxu0 0
    %81 = vmatprep.subr.bf16.mxu0 0
    %82 = vmatpush1.bf16.msra.mxu0 0
    %83 = vmatprep.subr.bf16.mxu0 0
    %84 = vmatpush1.bf16.msra.mxu0 0
    %85 = vmatprep.subr.bf16.mxu0 0
    %86 = vmatpush1.bf16.msra.mxu0 0
    %87 = vmatprep.subr.bf16.mxu0 0
    %88 = vmatpush1.bf16.msra.mxu0 0
    %89 = vmatprep.subr.bf16.mxu0 0
    %90 = vmatpush1.bf16.msra.mxu0 0
    %91 = vmatprep.subr.bf16.mxu0 0
    %92 = vmatpush1.bf16.msra.mxu0 0
    %93 = vmatprep.subr.bf16.mxu0 0
    %94 = vmatpush1.bf16.msra.mxu0 0
    %95 = vmatprep.mubr.bf16.mxu0 0
    %96 = vmatmul.mubr.bf16.gmra.mrb[0].mxu0 %v61
    %v97 = vpop.f32.mrb[0].mxu0
    %v98 = vadd.f32 %v51, %v97
    %v99 = vpop.f32.mrb[0].mxu0
    %v100 = vpop.f32.mrb[0].mxu0
    %v101 = vpop.f32.mrb[0].mxu0
    %102 = vdwg.mxu0
    %v103 = vmax.f32 %v98, 0.0
    %v104 = vpack.c.bf16 %v103, %v103
    %v105 = vld [vmem:[%s3] sm:$0xf]
    %v106 = vld [vmem:[%s3 + $0x4] sm:$0xf]
    %v107 = vld [vmem:[%s3 + $0x8] sm:$0xf]
    %v108 = vld [vmem:[%s3 + $0xc] sm:$0xf]
    %v109 = vld [vmem:[%s3 + $0x10] sm:$0xf]
    %v110 = vld [vmem:[%s3 + $0x14] sm:$0xf]
    %v111 = vld [vmem:[%s3 + $0x18] sm:$0xf]
    %v112 = vld [vmem:[%s3 + $0x1c] sm:$0xf]
    %v113 = vld [vmem:[%s3 + $0x20] sm:$0xf]
    %v114 = vld [vmem:[%s3 + $0x24] sm:$0xf]
    %v115 = vld [vmem:[%s3 + $0x28] sm:$0xf]
    %v116 = vld [vmem:[%s3 + $0x2c] sm:$0xf]
    %v117 = vld [vmem:[%s3 + $0x30] sm:$0xf]
    %v118 = vld [vmem:[%s3 + $0x34] sm:$0xf]
    %v119 = vld [vmem:[%s3 + $0x38] sm:$0xf]
    %v120 = vld [vmem:[%s3 + $0x3c] sm:$0xf]
    %v121 = vld [vmem:[%s4] sm:$0x1]
    %v123 = vlaneseq
    %v124 = vshrl.u32 %v123, 7
    %v125 = vsub.s32 0, %v124
    %v126 = vrot.slane %v121, %v125
    %v144 = vunpack.c.l.b16 %v105
    %v145 = vunpack.c.l.b16 %v106
    %v146 = vunpack.c.l.b16 %v107
    %v147 = vunpack.c.l.b16 %v108
    %v148 = vunpack.c.l.b16 %v109
    %v149 = vunpack.c.l.b16 %v110
    %v150 = vunpack.c.l.b16 %v111
    %v151 = vunpack.c.l.b16 %v112
    %v152 = vunpack.c.l.b16 %v113
    %v153 = vunpack.c.l.b16 %v114
    %v154 = vunpack.c.l.b16 %v115
    %v155 = vunpack.c.l.b16 %v116
    %v156 = vunpack.c.l.b16 %v117
    %v157 = vunpack.c.l.b16 %v118
    %v158 = vunpack.c.l.b16 %v119
    %v159 = vunpack.c.l.b16 %v120
    %v160 = vpack.c.b16 %v145, %v144
    %v161 = vpack.c.b16 %v147, %v146
    %v162 = vpack.c.b16 %v149, %v148
    %v163 = vpack.c.b16 %v151, %v150
    %v164 = vpack.c.b16 %v153, %v152
    %v165 = vpack.c.b16 %v155, %v154
    %v166 = vpack.c.b16 %v157, %v156
    %v167 = vpack.c.b16 %v159, %v158
    %176 = vmatprep.subr.bf16.mxu0 0
    %177 = vmatpush1.bf16.msra.mxu0 %v160
    %178 = vmatprep.subr.bf16.mxu0 0
    %179 = vmatpush1.bf16.msra.mxu0 %v161
    %180 = vmatprep.subr.bf16.mxu0 0
    %181 = vmatpush1.bf16.msra.mxu0 %v162
    %182 = vmatprep.subr.bf16.mxu0 0
    %183 = vmatpush1.bf16.msra.mxu0 %v163
    %184 = vmatprep.subr.bf16.mxu0 0
    %185 = vmatpush1.bf16.msra.mxu0 %v164
    %186 = vmatprep.subr.bf16.mxu0 0
    %187 = vmatpush1.bf16.msra.mxu0 %v165
    %188 = vmatprep.subr.bf16.mxu0 0
    %189 = vmatpush1.bf16.msra.mxu0 %v166
    %190 = vmatprep.subr.bf16.mxu0 0
    %191 = vmatpush1.bf16.msra.mxu0 %v167
    %192 = vmatprep.subr.bf16.mxu0 0
    %193 = vmatpush1.bf16.msra.mxu0 0
    %194 = vmatprep.subr.bf16.mxu0 0
    %195 = vmatpush1.bf16.msra.mxu0 0
    %196 = vmatprep.subr.bf16.mxu0 0
    %197 = vmatpush1.bf16.msra.mxu0 0
    %198 = vmatprep.subr.bf16.mxu0 0
    %199 = vmatpush1.bf16.msra.mxu0 0
    %200 = vmatprep.subr.bf16.mxu0 0
    %201 = vmatpush1.bf16.msra.mxu0 0
    %202 = vmatprep.subr.bf16.mxu0 0
    %203 = vmatpush1.bf16.msra.mxu0 0
    %204 = vmatprep.subr.bf16.mxu0 0
    %205 = vmatpush1.bf16.msra.mxu0 0
    %206 = vmatprep.subr.bf16.mxu0 0
    %207 = vmatpush1.bf16.msra.mxu0 0
    %208 = vmatprep.mubr.bf16.mxu0 0
    %209 = vmatmul.mubr.bf16.gmra.mrb[0].mxu0 %v104
    %v210 = vpop.f32.mrb[0].mxu0
    %v211 = vadd.f32 %v126, %v210
    %v212 = vpop.f32.mrb[0].mxu0
    %v213 = vpop.f32.mrb[0].mxu0
    %v214 = vpop.f32.mrb[0].mxu0
    %215 = vdwg.mxu0
    %v216 = vmax.f32 %v211, 0.0
    %v217 = vpack.c.bf16 %v216, %v216
    %v218 = vld [vmem:[%s5] sm:$0xf]
    %v219 = vld [vmem:[%s5 + $0x4] sm:$0xf]
    %v220 = vld [vmem:[%s5 + $0x8] sm:$0xf]
    %v221 = vld [vmem:[%s5 + $0xc] sm:$0xf]
    %v222 = vld [vmem:[%s5 + $0x10] sm:$0xf]
    %v223 = vld [vmem:[%s5 + $0x14] sm:$0xf]
    %v224 = vld [vmem:[%s5 + $0x18] sm:$0xf]
    %v225 = vld [vmem:[%s5 + $0x1c] sm:$0xf]
    %v226 = vld [vmem:[%s5 + $0x20] sm:$0xf]
    %v227 = vld [vmem:[%s5 + $0x24] sm:$0xf]
    %v228 = vld [vmem:[%s5 + $0x28] sm:$0xf]
    %v229 = vld [vmem:[%s5 + $0x2c] sm:$0xf]
    %v230 = vld [vmem:[%s5 + $0x30] sm:$0xf]
    %v231 = vld [vmem:[%s5 + $0x34] sm:$0xf]
    %v232 = vld [vmem:[%s5 + $0x38] sm:$0xf]
    %v233 = vld [vmem:[%s5 + $0x3c] sm:$0xf]
    %v234 = vld [vmem:[%s6] sm:$0x1]
    %v236 = vlaneseq
    %v237 = vshrl.u32 %v236, 7
    %v238 = vsub.s32 0, %v237
    %v239 = vrot.slane %v234, %v238
    %v257 = vunpack.c.l.b16 %v218
    %v258 = vunpack.c.l.b16 %v219
    %v259 = vunpack.c.l.b16 %v220
    %v260 = vunpack.c.l.b16 %v221
    %v261 = vunpack.c.l.b16 %v222
    %v262 = vunpack.c.l.b16 %v223
    %v263 = vunpack.c.l.b16 %v224
    %v264 = vunpack.c.l.b16 %v225
    %v265 = vunpack.c.l.b16 %v226
    %v266 = vunpack.c.l.b16 %v227
    %v267 = vunpack.c.l.b16 %v228
    %v268 = vunpack.c.l.b16 %v229
    %v269 = vunpack.c.l.b16 %v230
    %v270 = vunpack.c.l.b16 %v231
    %v271 = vunpack.c.l.b16 %v232
    %v272 = vunpack.c.l.b16 %v233
    %v273 = vpack.c.b16 %v258, %v257
    %v274 = vpack.c.b16 %v260, %v259
    %v275 = vpack.c.b16 %v262, %v261
    %v276 = vpack.c.b16 %v264, %v263
    %v277 = vpack.c.b16 %v266, %v265
    %v278 = vpack.c.b16 %v268, %v267
    %v279 = vpack.c.b16 %v270, %v269
    %v280 = vpack.c.b16 %v272, %v271
    %289 = vmatprep.subr.bf16.mxu0 0
    %290 = vmatpush1.bf16.msra.mxu0 %v273
    %291 = vmatprep.subr.bf16.mxu0 0
    %292 = vmatpush1.bf16.msra.mxu0 %v274
    %293 = vmatprep.subr.bf16.mxu0 0
    %294 = vmatpush1.bf16.msra.mxu0 %v275
    %295 = vmatprep.subr.bf16.mxu0 0
    %296 = vmatpush1.bf16.msra.mxu0 %v276
    %297 = vmatprep.subr.bf16.mxu0 0
    %298 = vmatpush1.bf16.msra.mxu0 %v277
    %299 = vmatprep.subr.bf16.mxu0 0
    %300 = vmatpush1.bf16.msra.mxu0 %v278
    %301 = vmatprep.subr.bf16.mxu0 0
    %302 = vmatpush1.bf16.msra.mxu0 %v279
    %303 = vmatprep.subr.bf16.mxu0 0
    %304 = vmatpush1.bf16.msra.mxu0 %v280
    %305 = vmatprep.subr.bf16.mxu0 0
    %306 = vmatpush1.bf16.msra.mxu0 0
    %307 = vmatprep.subr.bf16.mxu0 0
    %308 = vmatpush1.bf16.msra.mxu0 0
    %309 = vmatprep.subr.bf16.mxu0 0
    %310 = vmatpush1.bf16.msra.mxu0 0
    %311 = vmatprep.subr.bf16.mxu0 0
    %312 = vmatpush1.bf16.msra.mxu0 0
    %313 = vmatprep.subr.bf16.mxu0 0
    %314 = vmatpush1.bf16.msra.mxu0 0
    %315 = vmatprep.subr.bf16.mxu0 0
    %316 = vmatpush1.bf16.msra.mxu0 0
    %317 = vmatprep.subr.bf16.mxu0 0
    %318 = vmatpush1.bf16.msra.mxu0 0
    %319 = vmatprep.subr.bf16.mxu0 0
    %320 = vmatpush1.bf16.msra.mxu0 0
    %321 = vmatprep.mubr.bf16.mxu0 0
    %322 = vmatmul.mubr.bf16.gmra.mrb[0].mxu0 %v217
    %v323 = vpop.f32.mrb[0].mxu0
    %v324 = vadd.f32 %v239, %v323
    %v325 = vpop.f32.mrb[0].mxu0
    %v326 = vpop.f32.mrb[0].mxu0
    %v327 = vpop.f32.mrb[0].mxu0
    %328 = vdwg.mxu0
    %vm329 = vcmask 48128
    %330 = vst.msk [vmem:[#allocation5] sm:$0xff] %vm329, %v324
    // Predicated region
    $region34: #{tpu_custom_call.1} parent=1 // pred_check
      _
    $region35: #{tpu_custom_call.1} parent=1 // pred_check_branch
      %332 = sbr.rel (0) target = $region37
    $region36: #{tpu_custom_call.1} parent=1 // pred_region
      %s334 = ssub.s32 128, 128
      %335 = vsyncadd [#allocation4], %s334
      %s337 = sshll.u32 [#allocation5], 4
      %s338 = int_to_ptr.vmem [resolvable:$true] %s337
      %340 = dma.vmem_to_hbm [thread:$0]  %s338, 128, %s7, [#allocation4]
    $region37: #{tpu_custom_call.1} parent=1 // pred_fallthru
      _
    // Predicated region
    $region38: #{tpu_custom_call.1} parent=1 // pred_check
      _
    $region39: #{tpu_custom_call.1} parent=1 // pred_check_branch
      %342 = sbr.rel (0) target = $region41
    $region40: #{tpu_custom_call.1} parent=1 // pred_region
      %343 = dma.done [#allocation4], 128
    $region41: #{tpu_custom_call.1} parent=1 // pred_fallthru
      _
    %344 = vsyncpa [#allocation3], 1
    %345 = vsyncpa [#allocation4], 1

</llo_original>
